<compile_context>
chip_gen: v7x
topology: tpu7x:2x2x1
jax: 0.10.0
libtpu: 0.0.40
codegen_flags: <defaults>
</compile_context>

<pallas_src>
import functools

import jax
import jax.numpy as jnp
from jax import lax
from jax.experimental import pallas as pl
from jax.experimental.pallas import tpu as pltpu


def _round_up(v, m):
    return (v + m - 1) // m * m


def _conv_ln_kernel(x_ref, halo_ref, w_ref, b_ref, g_ref, beta_ref, o_ref, *, eps):
    # x_ref: (ts, D) f32 row tile.  halo_ref: (2, D) f32 = [row before tile, row after tile].
    x = x_ref[...]
    halo = halo_ref[...]

    # Sequence-shifted copies of the tile (halo rows at the edges), cast to
    # bf16 so the three conv taps run on the MXU's native bf16 path.
    x_prev = jnp.concatenate([halo[0:1, :], x[:-1, :]], axis=0).astype(jnp.bfloat16)
    x_mid = x.astype(jnp.bfloat16)
    x_next = jnp.concatenate([x[1:, :], halo[1:2, :]], axis=0).astype(jnp.bfloat16)

    # conv1d(K=3, same padding) == sum_k shift_k(x) @ W_k, f32 accumulation.
    acc = jnp.dot(x_prev, w_ref[0], preferred_element_type=jnp.float32)
    acc = acc + jnp.dot(x_mid, w_ref[1], preferred_element_type=jnp.float32)
    acc = acc + jnp.dot(x_next, w_ref[2], preferred_element_type=jnp.float32)
    conv = acc + b_ref[...]

    # Residual + LayerNorm over the feature axis, all in f32 (EUP rsqrt).
    r = x + conv
    mean = jnp.mean(r, axis=-1, keepdims=True)
    cent = r - mean
    var = jnp.mean(cent * cent, axis=-1, keepdims=True)
    inv = lax.rsqrt(var + eps)          # eps: python float -> inlined literal
    o_ref[...] = (cent * inv * g_ref[...] + beta_ref[...]).astype(o_ref.dtype)


def conv_module(x, conv_weight, conv_bias, ln_gamma, ln_beta, *,
                eps=1e-5, seq_tile=256):
    """SqueezeFormer ConvModule forward.

    x:            (B, S, d_model) f32
    conv_weight:  (d_model, d_model, K) f32  (PyTorch Conv1d layout: out, in, k)
    conv_bias:    (d_model,) f32
    ln_gamma / ln_beta: (d_model,) f32
    """
    B, S, D = x.shape
    c_out, c_in, K = conv_weight.shape
    assert c_out == D and c_in == D and K == 3, "kernel specialised for K=3, D->D conv"

    # Row tile: large enough to fill the MXU, multiple of 8 sublanes.
    ts = min(_round_up(seq_tile, 8), _round_up(S, 8))
    S_pad = _round_up(S, ts)
    n_tiles = S_pad // ts

    x_pad = jnp.pad(x, ((0, 0), (0, S_pad - S), (0, 0)))

    # Per-tile halo rows: halo[b, i, 0] = x[b, i*ts - 1] (zero at the front),
    #                     halo[b, i, 1] = x[b, (i+1)*ts] (zero past the end).
    zero_row = jnp.zeros((B, 1, D), x.dtype)
    full_prev = jnp.concatenate([zero_row, x_pad[:, :-1, :]], axis=1)
    full_next = jnp.concatenate([x_pad[:, 1:, :], zero_row], axis=1)
    halo = jnp.stack(
        [full_prev[:, 0::ts, :], full_next[:, ts - 1::ts, :]], axis=2)  # (B, n_tiles, 2, D)

    # Conv weights as K stacked (in, out) matrices, pre-cast to bf16.
    w_k = jnp.transpose(conv_weight, (2, 1, 0)).astype(jnp.bfloat16)     # (3, D, D)
    b_2 = conv_bias.reshape(1, D).astype(jnp.float32)
    g_2 = ln_gamma.reshape(1, D).astype(jnp.float32)
    beta_2 = ln_beta.reshape(1, D).astype(jnp.float32)

    kernel = functools.partial(_conv_ln_kernel, eps=float(eps))

    # Rough per-step VMEM need (double-buffered f32 x/out tiles + bf16 weights).
    vmem_need = 2 * (2 * ts * D * 4 + 3 * D * D * 2 + 8 * D * 4)
    cp_kwargs = dict(dimension_semantics=("parallel", "parallel"))
    if vmem_need > 24 * 1024 * 1024:
        cp_kwargs["vmem_limit_bytes"] = int(min(2 * vmem_need, 64 * 1024 * 1024))

    cost = pl.CostEstimate(
        flops=2 * B * S_pad * D * D * 3,
        transcendentals=B * S_pad,
        bytes_accessed=2 * B * S_pad * D * 4 + 3 * D * D * 2 + B * n_tiles * 2 * D * 4,
    )

    out = pl.pallas_call(
        kernel,
        out_shape=jax.ShapeDtypeStruct((B, S_pad, D), x.dtype),
        grid_spec=pltpu.PrefetchScalarGridSpec(
            num_scalar_prefetch=0,
            grid=(B, n_tiles),
            in_specs=[
                pl.BlockSpec((None, ts, D), lambda b, i: (b, i, 0)),          # x rows
                pl.BlockSpec((None, None, 2, D), lambda b, i: (b, i, 0, 0)),  # halo rows
                pl.BlockSpec((3, D, D), lambda b, i: (0, 0, 0)),              # conv weights (bf16)
                pl.BlockSpec((1, D), lambda b, i: (0, 0)),                    # conv bias
                pl.BlockSpec((1, D), lambda b, i: (0, 0)),                    # LN gamma
                pl.BlockSpec((1, D), lambda b, i: (0, 0)),                    # LN beta
            ],
            out_specs=pl.BlockSpec((None, ts, D), lambda b, i: (b, i, 0)),
        ),
        compiler_params=pltpu.CompilerParams(**cp_kwargs),
        cost_estimate=cost,
    )(x_pad, halo, w_k, b_2, g_2, beta_2)

    return out[:, :S, :]


def _reference(x, conv_weight, conv_bias, ln_gamma, ln_beta, eps=1e-5):
    B, S, D = x.shape
    xp = jnp.pad(x, ((0, 0), (1, 1), (0, 0)))
    conv = jnp.zeros((B, S, D), jnp.float32) + conv_bias
    for k in range(conv_weight.shape[-1]):
        conv = conv + jnp.einsum("bsd,de->bse", xp[:, k:k + S, :], conv_weight[:, :, k].T)
    r = x + conv
    mean = jnp.mean(r, axis=-1, keepdims=True)
    var = jnp.mean((r - mean) ** 2, axis=-1, keepdims=True)
    return (r - mean) * lax.rsqrt(var + eps) * ln_gamma + ln_beta


if __name__ == "__main__":
    B, S = 2, 20                 # S deliberately not a multiple of the seq tile
    d_model, ksize = 256, 3      # matches the module's d_model / kernel_size

    key = jax.random.PRNGKey(0)
    kx, kw, kb, kg, kbe = jax.random.split(key, 5)

    x = jax.random.normal(kx, (B, S, d_model), dtype=jnp.float32)

    # PyTorch Conv1d-style fan-in init.
    bound = 1.0 / (d_model * ksize) ** 0.5
    conv_weight = jax.random.uniform(kw, (d_model, d_model, ksize), jnp.float32, -bound, bound)
    conv_bias = jax.random.uniform(kb, (d_model,), jnp.float32, -bound, bound)
    ln_gamma = 1.0 + 0.1 * jax.random.normal(kg, (d_model,), jnp.float32)
    ln_beta = 0.1 * jax.random.normal(kbe, (d_model,), jnp.float32)

    # seq_tile=8 keeps the demo tiny while exercising multi-tile halos + padding
    # (production default is seq_tile=256 to fill the MXU).
    out = conv_module(x, conv_weight, conv_bias, ln_gamma, ln_beta, seq_tile=8)
    out = jax.block_until_ready(out)

    ref = _reference(x, conv_weight, conv_bias, ln_gamma, ln_beta)
    assert out.shape == (B, S, d_model)
    max_err = float(jnp.max(jnp.abs(out - ref)))
    # bf16 matmul inputs (f32 accumulation) -> slightly loosened tolerance vs f32 reference.
    assert jnp.allclose(out, ref, atol=2e-2, rtol=2e-2), max_err

    print("KERNEL_OK")
</pallas_src>

<mosaic_0001>
module attributes {stable_mosaic.version = 11 : i64} {
  func.func @_conv_ln_kernel(%arg0: i32, %arg1: i32, %arg2: memref<1x8x256xf32, #tpu.memory_space<vmem>>, %arg3: memref<1x1x2x256xf32, #tpu.memory_space<vmem>>, %arg4: memref<3x256x256xbf16, #tpu.memory_space<vmem>>, %arg5: memref<1x256xf32, #tpu.memory_space<vmem>>, %arg6: memref<1x256xf32, #tpu.memory_space<vmem>>, %arg7: memref<1x256xf32, #tpu.memory_space<vmem>>, %arg8: memref<1x8x256xf32, #tpu.memory_space<vmem>>) attributes {dimension_semantics = [#tpu.dimension_semantics<parallel>, #tpu.dimension_semantics<parallel>], iteration_bounds = array<i64: 2, 3>, scalar_prefetch = 0 : i64, scratch_operands = 0 : i64, tpu.core_type = #tpu.core_type<tc>, window_params = [{transform_indices = @transform_0, window_bounds = array<i64: 1, 8, 256>}, {transform_indices = @transform_1, window_bounds = array<i64: 1, 1, 2, 256>}, {pipeline_mode = #tpu.pipeline_mode<synchronous>, transform_indices = @transform_2, window_bounds = array<i64: 3, 256, 256>}, {pipeline_mode = #tpu.pipeline_mode<synchronous>, transform_indices = @transform_3, window_bounds = array<i64: 1, 256>}, {pipeline_mode = #tpu.pipeline_mode<synchronous>, transform_indices = @transform_4, window_bounds = array<i64: 1, 256>}, {pipeline_mode = #tpu.pipeline_mode<synchronous>, transform_indices = @transform_5, window_bounds = array<i64: 1, 256>}, {transform_indices = @transform_6, window_bounds = array<i64: 1, 8, 256>}]} {
    %c0 = arith.constant 0 : index
    %c0_0 = arith.constant 0 : index
    %c0_1 = arith.constant 0 : index
    %0 = vector.load %arg2[%c0, %c0_0, %c0_1] : memref<1x8x256xf32, #tpu.memory_space<vmem>>, vector<1x8x256xf32>
    %1 = vector.shape_cast %0 : vector<1x8x256xf32> to vector<8x256xf32>
    %c0_2 = arith.constant 0 : index
    %c0_3 = arith.constant 0 : index
    %c0_4 = arith.constant 0 : index
    %c0_5 = arith.constant 0 : index
    %2 = vector.load %arg3[%c0_2, %c0_3, %c0_4, %c0_5] : memref<1x1x2x256xf32, #tpu.memory_space<vmem>>, vector<1x1x2x256xf32>
    %3 = vector.shape_cast %2 : vector<1x1x2x256xf32> to vector<2x256xf32>
    %4 = vector.extract_strided_slice %3 {offsets = [0, 0], sizes = [1, 256], strides = [1, 1]} : vector<2x256xf32> to vector<1x256xf32>
    %5 = vector.extract_strided_slice %1 {offsets = [0, 0], sizes = [7, 256], strides = [1, 1]} : vector<8x256xf32> to vector<7x256xf32>
    %6 = tpu.concatenate %4, %5 in 0 : vector<1x256xf32>, vector<7x256xf32> -> vector<8x256xf32>
    %7 = arith.truncf %6 : vector<8x256xf32> to vector<8x256xbf16>
    %8 = arith.truncf %1 : vector<8x256xf32> to vector<8x256xbf16>
    %9 = vector.extract_strided_slice %1 {offsets = [1, 0], sizes = [7, 256], strides = [1, 1]} : vector<8x256xf32> to vector<7x256xf32>
    %10 = vector.extract_strided_slice %3 {offsets = [1, 0], sizes = [1, 256], strides = [1, 1]} : vector<2x256xf32> to vector<1x256xf32>
    %11 = tpu.concatenate %9, %10 in 0 : vector<7x256xf32>, vector<1x256xf32> -> vector<8x256xf32>
    %12 = arith.truncf %11 : vector<8x256xf32> to vector<8x256xbf16>
    %c0_6 = arith.constant 0 : index
    %c0_7 = arith.constant 0 : index
    %c0_8 = arith.constant 0 : index
    %13 = vector.load %arg4[%c0_6, %c0_7, %c0_8] : memref<3x256x256xbf16, #tpu.memory_space<vmem>>, vector<1x256x256xbf16>
    %14 = vector.shape_cast %13 : vector<1x256x256xbf16> to vector<256x256xbf16>
    %cst = arith.constant dense<0.000000e+00> : vector<8x256xf32>
    %15 = tpu.matmul %7, %14, %cst {dimension_numbers = #tpu.dot_dimension_numbers<[1], [0], [0], [1], [0, 0, 1, 1], [], []>} : vector<8x256xbf16>, vector<256x256xbf16>, vector<8x256xf32> -> vector<8x256xf32>
    %c1 = arith.constant 1 : index
    %c0_9 = arith.constant 0 : index
    %c0_10 = arith.constant 0 : index
    %16 = vector.load %arg4[%c1, %c0_9, %c0_10] : memref<3x256x256xbf16, #tpu.memory_space<vmem>>, vector<1x256x256xbf16>
    %17 = vector.shape_cast %16 : vector<1x256x256xbf16> to vector<256x256xbf16>
    %cst_11 = arith.constant dense<0.000000e+00> : vector<8x256xf32>
    %18 = tpu.matmul %8, %17, %cst_11 {dimension_numbers = #tpu.dot_dimension_numbers<[1], [0], [0], [1], [0, 0, 1, 1], [], []>} : vector<8x256xbf16>, vector<256x256xbf16>, vector<8x256xf32> -> vector<8x256xf32>
    %19 = arith.addf %15, %18 : vector<8x256xf32>
    %c2 = arith.constant 2 : index
    %c0_12 = arith.constant 0 : index
    %c0_13 = arith.constant 0 : index
    %20 = vector.load %arg4[%c2, %c0_12, %c0_13] : memref<3x256x256xbf16, #tpu.memory_space<vmem>>, vector<1x256x256xbf16>
    %21 = vector.shape_cast %20 : vector<1x256x256xbf16> to vector<256x256xbf16>
    %cst_14 = arith.constant dense<0.000000e+00> : vector<8x256xf32>
    %22 = tpu.matmul %12, %21, %cst_14 {dimension_numbers = #tpu.dot_dimension_numbers<[1], [0], [0], [1], [0, 0, 1, 1], [], []>} : vector<8x256xbf16>, vector<256x256xbf16>, vector<8x256xf32> -> vector<8x256xf32>
    %23 = arith.addf %19, %22 : vector<8x256xf32>
    %c0_15 = arith.constant 0 : index
    %c0_16 = arith.constant 0 : index
    %24 = vector.load %arg5[%c0_15, %c0_16] : memref<1x256xf32, #tpu.memory_space<vmem>>, vector<1x256xf32>
    %25 = vector.broadcast %24 : vector<1x256xf32> to vector<8x256xf32>
    %26 = arith.addf %23, %25 : vector<8x256xf32>
    %27 = arith.addf %1, %26 : vector<8x256xf32>
    %cst_17 = arith.constant dense<0.000000e+00> : vector<8xf32>
    %28 = vector.multi_reduction <add>, %27, %cst_17 [1] : vector<8x256xf32> to vector<8xf32>
    %29 = vector.shape_cast %28 : vector<8xf32> to vector<8x1xf32>
    %cst_18 = arith.constant 2.560000e+02 : f32
    %30 = vector.broadcast %cst_18 : f32 to vector<8x1xf32>
    %31 = arith.divf %29, %30 : vector<8x1xf32>
    %32 = vector.broadcast %31 : vector<8x1xf32> to vector<8x256xf32>
    %33 = arith.subf %27, %32 : vector<8x256xf32>
    %34 = arith.mulf %33, %33 : vector<8x256xf32>
    %cst_19 = arith.constant dense<0.000000e+00> : vector<8xf32>
    %35 = vector.multi_reduction <add>, %34, %cst_19 [1] : vector<8x256xf32> to vector<8xf32>
    %36 = vector.shape_cast %35 : vector<8xf32> to vector<8x1xf32>
    %cst_20 = arith.constant 2.560000e+02 : f32
    %37 = vector.broadcast %cst_20 : f32 to vector<8x1xf32>
    %38 = arith.divf %36, %37 : vector<8x1xf32>
    %cst_21 = arith.constant 9.99999974E-6 : f32
    %39 = vector.broadcast %cst_21 : f32 to vector<8x1xf32>
    %40 = arith.addf %38, %39 : vector<8x1xf32>
    %41 = math.rsqrt %40 : vector<8x1xf32>
    %42 = vector.broadcast %41 : vector<8x1xf32> to vector<8x256xf32>
    %43 = arith.mulf %33, %42 : vector<8x256xf32>
    %c0_22 = arith.constant 0 : index
    %c0_23 = arith.constant 0 : index
    %44 = vector.load %arg6[%c0_22, %c0_23] : memref<1x256xf32, #tpu.memory_space<vmem>>, vector<1x256xf32>
    %45 = vector.broadcast %44 : vector<1x256xf32> to vector<8x256xf32>
    %46 = arith.mulf %43, %45 : vector<8x256xf32>
    %c0_24 = arith.constant 0 : index
    %c0_25 = arith.constant 0 : index
    %47 = vector.load %arg7[%c0_24, %c0_25] : memref<1x256xf32, #tpu.memory_space<vmem>>, vector<1x256xf32>
    %48 = vector.broadcast %47 : vector<1x256xf32> to vector<8x256xf32>
    %49 = arith.addf %46, %48 : vector<8x256xf32>
    %c0_26 = arith.constant 0 : index
    %c0_27 = arith.constant 0 : index
    %c0_28 = arith.constant 0 : index
    %50 = vector.load %arg8[%c0_26, %c0_27, %c0_28] : memref<1x8x256xf32, #tpu.memory_space<vmem>>, vector<1x8x256xf32>
    %51 = vector.shape_cast %50 : vector<1x8x256xf32> to vector<8x256xf32>
    %52 = vector.shape_cast %49 : vector<8x256xf32> to vector<1x8x256xf32>
    tpu.vector_store %arg8[%c0_26, %c0_27, %c0_28], %52 {strides = array<i32>} : memref<1x8x256xf32, #tpu.memory_space<vmem>>, vector<1x8x256xf32>,
    return
  }
  func.func @transform_0(%arg0: i32, %arg1: i32) -> (i32, i32, i32) {
    %c0_i32 = arith.constant 0 : i32
    %c0_i32_0 = arith.constant 0 : i32
    return %arg0, %arg1, %c0_i32 : i32, i32, i32
  }
  func.func @transform_1(%arg0: i32, %arg1: i32) -> (i32, i32, i32, i32) {
    %c0_i32 = arith.constant 0 : i32
    %c0_i32_0 = arith.constant 0 : i32
    %c0_i32_1 = arith.constant 0 : i32
    return %arg0, %arg1, %c0_i32, %c0_i32_0 : i32, i32, i32, i32
  }
  func.func @transform_2(%arg0: i32, %arg1: i32) -> (i32, i32, i32) {
    %c0_i32 = arith.constant 0 : i32
    %c0_i32_0 = arith.constant 0 : i32
    %c0_i32_1 = arith.constant 0 : i32
    %c0_i32_2 = arith.constant 0 : i32
    return %c0_i32, %c0_i32_0, %c0_i32_1 : i32, i32, i32
  }
  func.func @transform_3(%arg0: i32, %arg1: i32) -> (i32, i32) {
    %c0_i32 = arith.constant 0 : i32
    %c0_i32_0 = arith.constant 0 : i32
    %c0_i32_1 = arith.constant 0 : i32
    return %c0_i32, %c0_i32_0 : i32, i32
  }
  func.func @transform_4(%arg0: i32, %arg1: i32) -> (i32, i32) {
    %c0_i32 = arith.constant 0 : i32
    %c0_i32_0 = arith.constant 0 : i32
    %c0_i32_1 = arith.constant 0 : i32
    return %c0_i32, %c0_i32_0 : i32, i32
  }
  func.func @transform_5(%arg0: i32, %arg1: i32) -> (i32, i32) {
    %c0_i32 = arith.constant 0 : i32
    %c0_i32_0 = arith.constant 0 : i32
    %c0_i32_1 = arith.constant 0 : i32
    return %c0_i32, %c0_i32_0 : i32, i32
  }
  func.func @transform_6(%arg0: i32, %arg1: i32) -> (i32, i32, i32) {
    %c0_i32 = arith.constant 0 : i32
    %c0_i32_0 = arith.constant 0 : i32
    return %arg0, %arg1, %c0_i32 : i32, i32, i32
  }
}

</mosaic_0001>

<llo_original>
// kernel: tpu_custom_call.1
$region0: #{tpu_custom_call.1}
  #allocation0 [shape = 'u32[]', space=smem, size = 0x4, offset = 0x4, fixed_abs, tag = 'smem constant byte address 0x4 - core index']
  #allocation1 [shape = 'u32[144,128]{1,0:T(1,128)}', space=vmem, size = 0x12000, scoped, tag = 'internal scratch']
  %s0 = inlined_call_operand.hbm [shape: f32[2,24,256], index: 0, kind: input, shape index: {}]
  %s1 = inlined_call_operand.hbm [shape: f32[2,3,2,256], index: 1, kind: input, shape index: {}]
  %s2 = inlined_call_operand.hbm [shape: bf16[3,256,256], index: 2, kind: input, shape index: {}]
  %s3 = inlined_call_operand.vmem [shape: f32[1,256], index: 3, kind: input, shape index: {}]
  %s4 = inlined_call_operand.vmem [shape: f32[1,256], index: 4, kind: input, shape index: {}]
  %s5 = inlined_call_operand.vmem [shape: f32[1,256], index: 5, kind: input, shape index: {}]
  %s6 = inlined_call_operand.hbm [shape: f32[2,24,256], index: 6, kind: output, shape index: {}]
  %s7 = sld [smem:[#allocation0]]
  $region69: #{tpu_custom_call.1} parent=0
    _
  %s9 = ssub.s32 1, %s7
  %s10 = scalar_select 0, %s9, %s7
  $region1: #{tpu_custom_call.1} parent=0
    #allocation2 [shape = 'u8[16384]{0}', space=vmem, size = 0x4000, scoped, tag = 'input window, operand 0']
    #allocation3 [shape = 's32[2]{0}', space=sflag, size = 0x8, scoped, tag = 'scoped memory for tpu_custom_call.1']
    #allocation4 [shape = 's32[2]{0}', space=sflag, size = 0x8, scoped, tag = 'scoped memory for tpu_custom_call.1']
    #allocation5 [shape = 'u8[4096]{0}', space=vmem, size = 0x1000, scoped, tag = 'input window, operand 1']
    #allocation6 [shape = 's32[2]{0}', space=sflag, size = 0x8, scoped, tag = 'scoped memory for tpu_custom_call.1']
    #allocation7 [shape = 'u8[393216]{0}', space=vmem, size = 0x60000, scoped, tag = 'input window, operand 2, single buffered']
    #allocation8 [shape = 'u8[16384]{0}', space=vmem, size = 0x4000, scoped, tag = 'output window, operand 0']
    %11 = vsyncpa [#allocation3], 0
    %s12 = scalar_lea.sflag [#allocation3], 1
    %13 = vsyncpa %s12, 0
    %14 = vsyncpa [#allocation6], 0
    %s15 = scalar_lea.sflag [#allocation6], 1
    %16 = vsyncpa %s15, 0
    %17 = vsyncpa [#allocation4], 0
    %s18 = scalar_lea.sflag [#allocation4], 1
    %19 = vsyncpa %s18, 0
    loop: start=0, step=1, limit=8
    $region2: #{tpu_custom_call.1} parent=1 // loop_pre_header
      _
    $region3: #{tpu_custom_call.1} parent=1 // loop_header
      %s21 = sphi 0, %s25
      %p22 = scmp.ge.s32.totalorder %s21, 8
      %s28 = sphi 0, %s40
      %s29 = sphi 0, %s36
      %s30 = sphi 0, %s28
      %s31 = sphi 0, %s29
      %s32 = sphi 0, %s30
      %s33 = sphi 0, %s31
      %s45 = sphi 0, %s47
      %s48 = sphi 0, %s45
      %s49 = sphi 0, %s48
      %s65 = sphi 0, %s49
      %s73 = sphi 0, %s75
      %s76 = sphi 0, %s73
      %s77 = sphi 0, %s76
      %s93 = sphi 0, %s77
      %s97 = sphi 0, %s97
      %s99 = sphi 0, %s97
      %s100 = sphi 0, %s99
      %s114 = sphi 0, %s100
      %s118 = sphi 0, %s118
      %s120 = sphi 0, %s118
      %s121 = sphi 0, %s120
      %s135 = sphi 0, %s121
      %s139 = sphi 0, %s139
      %s141 = sphi 0, %s139
      %s142 = sphi 0, %s141
      %s156 = sphi 0, %s142
      %s160 = sphi 0, %s160
      %s162 = sphi 0, %s160
      %s163 = sphi 0, %s162
      %s177 = sphi 0, %s163
      %s185 = sphi 0, %s187
      %s188 = sphi 0, %s185
      %s189 = sphi 0, %s188
      %s205 = sphi 0, %s189
    $region4: #{tpu_custom_call.1} parent=1 // loop_header_branch
      %24 = sbr.rel (%p22) target = $region8
    $region5: #{tpu_custom_call.1} parent=1 // loop_body
      %s26 = ssub.s32 %s21, 1
      %s27 = ssub.s32 %s21, 2
      %s34 = sadd.s32 1, %s29
      %p35 = scmp.ge.s32.totalorder %s34, 3
      %s36 = scalar_select %p35, 0, %s34
      %s37 = sadd.s32 1, %s28
      %s38 = scalar_select %p35, %s37, %s28
      %p39 = scmp.ge.s32.totalorder %s38, 2
      %s40 = scalar_select %p39, 0, %s38
      %s41 = ssub.s32 %s28, %s40
      %s42 = ssub.s32 %s29, %s36
      %s43 = sor.u32 %s41, %s42
      %p44 = scmp.eq.s32.totalorder %s43, 0
      %s46 = sadd.s32 %s45, 1
      %s47 = scalar_select %p44, %s45, %s46
      %p50 = pneg %p44
      %p51 = scmp.eq.s32.totalorder %s21, 5
      %p52 = por %p50, %p51
      %p53 = scmp.ne.s32.totalorder %s45, %s48
      %p54 = scmp.eq.s32.totalorder %s21, 0
      %p55 = por %p53, %p54
      %p56 = scmp.ne.s32.totalorder %s45, %s48
      %p57 = scmp.eq.s32.totalorder %s26, 5
      %p58 = por %p56, %p57
      %p59 = scmp.ne.s32.totalorder %s48, %s49
      %p60 = scmp.eq.s32.totalorder %s26, 0
      %p61 = por %p59, %p60
      %p62 = scmp.ne.s32.totalorder %s48, %s49
      %p63 = scmp.eq.s32.totalorder %s27, 5
      %p64 = por %p62, %p63
      %p66 = scmp.ne.s32.totalorder %s49, %s65
      %p67 = scmp.eq.s32.totalorder %s27, 0
      %p68 = por %p66, %p67
      %s69 = ssub.s32 %s28, %s40
      %s70 = ssub.s32 %s29, %s36
      %s71 = sor.u32 %s69, %s70
      %p72 = scmp.eq.s32.totalorder %s71, 0
      %s74 = sadd.s32 %s73, 1
      %s75 = scalar_select %p72, %s73, %s74
      %p78 = pneg %p72
      %p79 = scmp.eq.s32.totalorder %s21, 5
      %p80 = por %p78, %p79
      %p81 = scmp.ne.s32.totalorder %s73, %s76
      %p82 = scmp.eq.s32.totalorder %s21, 0
      %p83 = por %p81, %p82
      %p84 = scmp.ne.s32.totalorder %s73, %s76
      %p85 = scmp.eq.s32.totalorder %s26, 5
      %p86 = por %p84, %p85
      %p87 = scmp.ne.s32.totalorder %s76, %s77
      %p88 = scmp.eq.s32.totalorder %s26, 0
      %p89 = por %p87, %p88
      %p90 = scmp.ne.s32.totalorder %s76, %s77
      %p91 = scmp.eq.s32.totalorder %s27, 5
      %p92 = por %p90, %p91
      %p94 = scmp.ne.s32.totalorder %s77, %s93
      %p95 = scmp.eq.s32.totalorder %s27, 0
      %p96 = por %p94, %p95
      %s98 = sadd.s32 %s97, 1
      %p101 = scmp.eq.s32.totalorder %s21, 5
      %p102 = scmp.ne.s32.totalorder %s97, %s99
      %p103 = scmp.eq.s32.totalorder %s21, 0
      %p104 = por %p102, %p103
      %p105 = scmp.ne.s32.totalorder %s97, %s99
      %p106 = scmp.eq.s32.totalorder %s26, 5
      %p107 = por %p105, %p106
      %p108 = scmp.ne.s32.totalorder %s99, %s100
      %p109 = scmp.eq.s32.totalorder %s26, 0
      %p110 = por %p108, %p109
      %p111 = scmp.ne.s32.totalorder %s99, %s100
      %p112 = scmp.eq.s32.totalorder %s27, 5
      %p113 = por %p111, %p112
      %p115 = scmp.ne.s32.totalorder %s100, %s114
      %p116 = scmp.eq.s32.totalorder %s27, 0
      %p117 = por %p115, %p116
      %s119 = sadd.s32 %s118, 1
      %p122 = scmp.eq.s32.totalorder %s21, 5
      %p123 = scmp.ne.s32.totalorder %s118, %s120
      %p124 = scmp.eq.s32.totalorder %s21, 0
      %p125 = por %p123, %p124
      %p126 = scmp.ne.s32.totalorder %s118, %s120
      %p127 = scmp.eq.s32.totalorder %s26, 5
      %p128 = por %p126, %p127
      %p129 = scmp.ne.s32.totalorder %s120, %s121
      %p130 = scmp.eq.s32.totalorder %s26, 0
      %p131 = por %p129, %p130
      %p132 = scmp.ne.s32.totalorder %s120, %s121
      %p133 = scmp.eq.s32.totalorder %s27, 5
      %p134 = por %p132, %p133
      %p136 = scmp.ne.s32.totalorder %s121, %s135
      %p137 = scmp.eq.s32.totalorder %s27, 0
      %p138 = por %p136, %p137
      %s140 = sadd.s32 %s139, 1
      %p143 = scmp.eq.s32.totalorder %s21, 5
      %p144 = scmp.ne.s32.totalorder %s139, %s141
      %p145 = scmp.eq.s32.totalorder %s21, 0
      %p146 = por %p144, %p145
      %p147 = scmp.ne.s32.totalorder %s139, %s141
      %p148 = scmp.eq.s32.totalorder %s26, 5
      %p149 = por %p147, %p148
      %p150 = scmp.ne.s32.totalorder %s141, %s142
      %p151 = scmp.eq.s32.totalorder %s26, 0
      %p152 = por %p150, %p151
      %p153 = scmp.ne.s32.totalorder %s141, %s142
      %p154 = scmp.eq.s32.totalorder %s27, 5
      %p155 = por %p153, %p154
      %p157 = scmp.ne.s32.totalorder %s142, %s156
      %p158 = scmp.eq.s32.totalorder %s27, 0
      %p159 = por %p157, %p158
      %s161 = sadd.s32 %s160, 1
      %p164 = scmp.eq.s32.totalorder %s21, 5
      %p165 = scmp.ne.s32.totalorder %s160, %s162
      %p166 = scmp.eq.s32.totalorder %s21, 0
      %p167 = por %p165, %p166
      %p168 = scmp.ne.s32.totalorder %s160, %s162
      %p169 = scmp.eq.s32.totalorder %s26, 5
      %p170 = por %p168, %p169
      %p171 = scmp.ne.s32.totalorder %s162, %s163
      %p172 = scmp.eq.s32.totalorder %s26, 0
      %p173 = por %p171, %p172
      %p174 = scmp.ne.s32.totalorder %s162, %s163
      %p175 = scmp.eq.s32.totalorder %s27, 5
      %p176 = por %p174, %p175
      %p178 = scmp.ne.s32.totalorder %s163, %s177
      %p179 = scmp.eq.s32.totalorder %s27, 0
      %p180 = por %p178, %p179
      %s181 = ssub.s32 %s28, %s40
      %s182 = ssub.s32 %s29, %s36
      %s183 = sor.u32 %s181, %s182
      %p184 = scmp.eq.s32.totalorder %s183, 0
      %s186 = sadd.s32 %s185, 1
      %s187 = scalar_select %p184, %s185, %s186
      %p190 = pneg %p184
      %p191 = scmp.eq.s32.totalorder %s21, 5
      %p192 = por %p190, %p191
      %p193 = scmp.ne.s32.totalorder %s185, %s188
      %p194 = scmp.eq.s32.totalorder %s21, 0
      %p195 = por %p193, %p194
      %p196 = scmp.ne.s32.totalorder %s185, %s188
      %p197 = scmp.eq.s32.totalorder %s26, 5
      %p198 = por %p196, %p197
      %p199 = scmp.ne.s32.totalorder %s188, %s189
      %p200 = scmp.eq.s32.totalorder %s26, 0
      %p201 = por %p199, %p200
      %p202 = scmp.ne.s32.totalorder %s188, %s189
      %p203 = scmp.eq.s32.totalorder %s27, 5
      %p204 = por %p202, %p203
      %p206 = scmp.ne.s32.totalorder %s189, %s205
      %p207 = scmp.eq.s32.totalorder %s27, 0
      %p208 = por %p206, %p207
      %p209 = scmp.le.s32.totalorder 1, %s21
      %p210 = scmp.lt.s32.totalorder %s21, 7
      %p211 = pnand %p209, %p210
      %p212 = pneg %p211
      // Predicated region
      $region9: #{tpu_custom_call.1} parent=5 // pred_check
        _
      $region10: #{tpu_custom_call.1} parent=5 // pred_check_branch
        %214 = sbr.rel (%p211) target = $region12
      $region11: #{tpu_custom_call.1} parent=5 // pred_region
        %s215 = ssub.s32 %s21, 1
        // Predicated region
        $region13: #{tpu_custom_call.1} parent=11 // pred_check
          %p216 = pneg %p110
        $region14: #{tpu_custom_call.1} parent=11 // pred_check_branch
          %218 = sbr.rel (%p216) target = $region16
        $region15: #{tpu_custom_call.1} parent=11 // pred_region
          %s220 = ssub.s32 12288, 12288
          %221 = vsyncadd [#allocation6], %s220
          %s222 = sshll.u32 [#allocation7], 4
          %s223 = int_to_ptr.vmem [resolvable:$true] %s222
          %228 = dma.hbm_to_vmem [thread:$0]  %s2, 12288, %s223, [#allocation6], 128, 128, 8
        $region16: #{tpu_custom_call.1} parent=11 // pred_fallthru
          _
        // Predicated region
        $region17: #{tpu_custom_call.1} parent=11 // pred_check
          %p229 = pneg %p131
        $region18: #{tpu_custom_call.1} parent=11 // pred_check_branch
          %231 = sbr.rel (%p229) target = $region20
        $region19: #{tpu_custom_call.1} parent=11 // pred_region
          _
        $region20: #{tpu_custom_call.1} parent=11 // pred_fallthru
          _
        // Predicated region
        $region21: #{tpu_custom_call.1} parent=11 // pred_check
          %p232 = pneg %p152
        $region22: #{tpu_custom_call.1} parent=11 // pred_check_branch
          %234 = sbr.rel (%p232) target = $region24
        $region23: #{tpu_custom_call.1} parent=11 // pred_region
          _
        $region24: #{tpu_custom_call.1} parent=11 // pred_fallthru
          _
        // Predicated region
        $region25: #{tpu_custom_call.1} parent=11 // pred_check
          %p235 = pneg %p173
        $region26: #{tpu_custom_call.1} parent=11 // pred_check_branch
          %237 = sbr.rel (%p235) target = $region28
        $region27: #{tpu_custom_call.1} parent=11 // pred_region
          _
        $region28: #{tpu_custom_call.1} parent=11 // pred_fallthru
          _
      $region12: #{tpu_custom_call.1} parent=5 // pred_fallthru
        _
      %p238 = scmp.lt.s32.totalorder %s21, 6
      // Predicated region
      $region29: #{tpu_custom_call.1} parent=5 // pred_check
        %p239 = pneg %p238
      $region30: #{tpu_custom_call.1} parent=5 // pred_check_branch
        %241 = sbr.rel (%p239) target = $region32
      $region31: #{tpu_custom_call.1} parent=5 // pred_region
        // Predicated region
        $region33: #{tpu_custom_call.1} parent=31 // pred_check
          %p242 = pneg %p55
        $region34: #{tpu_custom_call.1} parent=31 // pred_check_branch
          %244 = sbr.rel (%p242) target = $region36
        $region35: #{tpu_custom_call.1} parent=31 // pred_region
          %s245 = sand.u32 %s45, 1
          %s246 = scalar_lea.sflag [#allocation3], %s245
          %s247 = sand.u32 %s45, 1
          %s248 = smul.addr %s247, 16
          %s249 = scalar_lea.vmem [#allocation2], %s248
          %s251 = ssub.s32 256, 256
          %252 = vsyncadd %s246, %s251
          %s253 = smul.addr %s29, 2
          %s254 = smul.addr %s28, 6
          %s255 = sadd.s32 %s253, %s254
          %s256 = smul.addr %s255, 128
          %s257 = scalar_lea.hbm %s0, %s256
          %s259 = sshll.u32 %s249, 4
          %s260 = int_to_ptr.vmem [resolvable:$true] %s259
          %262 = dma.hbm_to_vmem [thread:$0]  %s257, 256, %s260, %s246
        $region36: #{tpu_custom_call.1} parent=31 // pred_fallthru
          _
        // Predicated region
        $region37: #{tpu_custom_call.1} parent=31 // pred_check
          %p263 = pneg %p83
        $region38: #{tpu_custom_call.1} parent=31 // pred_check_branch
          %265 = sbr.rel (%p263) target = $region40
        $region39: #{tpu_custom_call.1} parent=31 // pred_region
          %s266 = sand.u32 %s21, 1
          %s267 = scalar_lea.sflag [#allocation6], %s266
          %s268 = sand.u32 %s73, 1
          %s269 = smul.addr %s268, 4
          %s270 = scalar_lea.vmem [#allocation5], %s269
          %s272 = ssub.s32 64, 64
          %273 = vsyncadd %s267, %s272
          %s274 = smul.addr %s29, 2
          %s275 = smul.addr %s28, 6
          %s276 = sadd.s32 %s274, %s275
          %s277 = smul.addr %s276, 32
          %s278 = scalar_lea.hbm %s1, %s277
          %s280 = sshll.u32 %s270, 4
          %s281 = int_to_ptr.vmem [resolvable:$true] %s280
          %283 = dma.hbm_to_vmem [thread:$0]  %s278, 64, %s281, %s267
        $region40: #{tpu_custom_call.1} parent=31 // pred_fallthru
          _
      $region32: #{tpu_custom_call.1} parent=5 // pred_fallthru
        _
      %p284 = scmp.le.s32.totalorder 1, %s21
      %p285 = scmp.lt.s32.totalorder %s21, 7
      %p286 = pnand %p284, %p285
      %p287 = pneg %p286
      // Predicated region
      $region41: #{tpu_custom_call.1} parent=5 // pred_check
        _
      $region42: #{tpu_custom_call.1} parent=5 // pred_check_branch
        %289 = sbr.rel (%p286) target = $region44
      $region43: #{tpu_custom_call.1} parent=5 // pred_region
        %s290 = ssub.s32 %s21, 1
        %s291 = sand.u32 %s48, 1
        %s292 = scalar_lea.sflag [#allocation3], %s291
        %s293 = sand.u32 %s48, 1
        %s294 = smul.addr %s293, 16
        %s295 = scalar_lea.vmem [#allocation2], %s294
        // Predicated region
        $region45: #{tpu_custom_call.1} parent=43 // pred_check
          %p296 = pneg %p61
        $region46: #{tpu_custom_call.1} parent=43 // pred_check_branch
          %298 = sbr.rel (%p296) target = $region48
        $region47: #{tpu_custom_call.1} parent=43 // pred_region
          %299 = dma.done %s292, 256
        $region48: #{tpu_custom_call.1} parent=43 // pred_fallthru
          _
        %s300 = sand.u32 %s26, 1
        %s301 = scalar_lea.sflag [#allocation6], %s300
        %s302 = sand.u32 %s76, 1
        %s303 = smul.addr %s302, 4
        %s304 = scalar_lea.vmem [#allocation5], %s303
        // Predicated region
        $region49: #{tpu_custom_call.1} parent=43 // pred_check
          %p305 = pneg %p89
        $region50: #{tpu_custom_call.1} parent=43 // pred_check_branch
          %307 = sbr.rel (%p305) target = $region52
        $region51: #{tpu_custom_call.1} parent=43 // pred_region
          %308 = dma.done %s301, 64
        $region52: #{tpu_custom_call.1} parent=43 // pred_fallthru
          _
        // Predicated region
        $region53: #{tpu_custom_call.1} parent=43 // pred_check
          %p309 = pneg %p110
        $region54: #{tpu_custom_call.1} parent=43 // pred_check_branch
          %311 = sbr.rel (%p309) target = $region56
        $region55: #{tpu_custom_call.1} parent=43 // pred_region
          %312 = dma.done [#allocation6], 12288
        $region56: #{tpu_custom_call.1} parent=43 // pred_fallthru
          _
        %s313 = sand.u32 %s48, 1
        %s314 = scalar_lea.sflag [#allocation3], %s313
        %s315 = sand.u32 %s48, 1
        %s316 = smul.addr %s315, 16
        %s317 = scalar_lea.vmem [#allocation2], %s316
        %p318 = pneg %p61
        %p319 = pneg %p58
        %s320 = sand.u32 %s26, 1
        %s321 = scalar_lea.sflag [#allocation6], %s320
        %s322 = sand.u32 %s76, 1
        %s323 = smul.addr %s322, 4
        %s324 = scalar_lea.vmem [#allocation5], %s323
        %p325 = pneg %p89
        %p326 = pneg %p86
        %p327 = pneg %p110
        %p328 = pneg %p107
        %p329 = pneg %p131
        %p330 = pneg %p128
        %p331 = pneg %p152
        %p332 = pneg %p149
        %p333 = pneg %p173
        %p334 = pneg %p170
        %p335 = pneg %p201
        %p336 = pneg %p198
        %s337 = sand.u32 %s188, 1
        %s338 = scalar_lea.sflag [#allocation4], %s337
        %s339 = sand.u32 %s188, 1
        %s340 = smul.addr %s339, 16
        %s341 = scalar_lea.vmem [#allocation8], %s340
        %v342 = vld [vmem:[%s295] sm:$0xff]
        %v343 = vld [vmem:[%s295 + $0x8] sm:$0xff]
        %v344 = vld [vmem:[%s304] sm:$0xf]
        %v346 = vlaneseq
        %v347 = vshrl.u32 %v346, 7
        %v348 = vsub.s32 0, %v347
        %v349 = vrot.slane %v344, %v348
        %v350 = vlaneseq
        %v351 = vshrl.u32 %v350, 7
        %v352 = vsub.s32 2, %v351
        %v353 = vrot.slane %v344, %v352
        %v358 = vrot.slane %v342, 7
        %v359 = vrot.slane %v343, 7
        %vm362 = vcmask 1040384
        %v363 = vsel %vm362, %v349, %v358
        %v364 = vsel %vm362, %v353, %v359
        %v365 = vpack.c.bf16 %v363, %v363
        %v366 = vpack.c.bf16 %v364, %v364
        %v367 = vpack.c.bf16 %v342, %v342
        %v368 = vpack.c.bf16 %v343, %v343
        %v369 = vrot.slane %v342, 1
        %v370 = vrot.slane %v343, 1
        %v373 = vlaneseq
        %v374 = vshrl.u32 %v373, 7
        %v375 = vsub.s32 1, %v374
        %v376 = vrot.slane %v344, %v375
        %v377 = vlaneseq
        %v378 = vshrl.u32 %v377, 7
        %v379 = vsub.s32 3, %v378
        %v380 = vrot.slane %v344, %v379
        %vm383 = vcmask 1046528
        %v384 = vsel %vm383, %v369, %v376
        %v385 = vsel %vm383, %v370, %v380
        %v386 = vpack.c.bf16 %v384, %v384
        %v387 = vpack.c.bf16 %v385, %v385
        %v388 = vld [vmem:[#allocation7] sm:$0xff]
        %v389 = vld [vmem:[#allocation7 + $0x8] sm:$0xff]
        %v390 = vld [vmem:[#allocation7 + $0x10] sm:$0xff]
        %v391 = vld [vmem:[#allocation7 + $0x18] sm:$0xff]
        %v392 = vld [vmem:[#allocation7 + $0x20] sm:$0xff]
        %v393 = vld [vmem:[#allocation7 + $0x28] sm:$0xff]
        %v394 = vld [vmem:[#allocation7 + $0x30] sm:$0xff]
        %v395 = vld [vmem:[#allocation7 + $0x38] sm:$0xff]
        %v396 = vld [vmem:[#allocation7 + $0x40] sm:$0xff]
        %v397 = vld [vmem:[#allocation7 + $0x48] sm:$0xff]
        %v398 = vld [vmem:[#allocation7 + $0x50] sm:$0xff]
        %v399 = vld [vmem:[#allocation7 + $0x58] sm:$0xff]
        %v400 = vld [vmem:[#allocation7 + $0x60] sm:$0xff]
        %v401 = vld [vmem:[#allocation7 + $0x68] sm:$0xff]
        %v402 = vld [vmem:[#allocation7 + $0x70] sm:$0xff]
        %v403 = vld [vmem:[#allocation7 + $0x78] sm:$0xff]
        %v404 = vld [vmem:[#allocation7 + $0x80] sm:$0xff]
        %v405 = vld [vmem:[#allocation7 + $0x88] sm:$0xff]
        %v406 = vld [vmem:[#allocation7 + $0x90] sm:$0xff]
        %v407 = vld [vmem:[#allocation7 + $0x98] sm:$0xff]
        %v408 = vld [vmem:[#allocation7 + $0xa0] sm:$0xff]
        %v409 = vld [vmem:[#allocation7 + $0xa8] sm:$0xff]
        %v410 = vld [vmem:[#allocation7 + $0xb0] sm:$0xff]
        %v411 = vld [vmem:[#allocation7 + $0xb8] sm:$0xff]
        %v412 = vld [vmem:[#allocation7 + $0xc0] sm:$0xff]
        %v413 = vld [vmem:[#allocation7 + $0xc8] sm:$0xff]
        %v414 = vld [vmem:[#allocation7 + $0xd0] sm:$0xff]
        %v415 = vld [vmem:[#allocation7 + $0xd8] sm:$0xff]
        %v416 = vld [vmem:[#allocation7 + $0xe0] sm:$0xff]
        %v417 = vld [vmem:[#allocation7 + $0xe8] sm:$0xff]
        %v418 = vld [vmem:[#allocation7 + $0xf0] sm:$0xff]
        %v419 = vld [vmem:[#allocation7 + $0xf8] sm:$0xff]
        %s420 = scalar_lea.vmem [#allocation7], 256
        %v421 = vld [vmem:[%s420] sm:$0xff]
        %v422 = vld [vmem:[%s420 + $0x8] sm:$0xff]
        %v423 = vld [vmem:[%s420 + $0x10] sm:$0xff]
        %v424 = vld [vmem:[%s420 + $0x18] sm:$0xff]
        %v425 = vld [vmem:[%s420 + $0x20] sm:$0xff]
        %v426 = vld [vmem:[%s420 + $0x28] sm:$0xff]
        %v427 = vld [vmem:[%s420 + $0x30] sm:$0xff]
        %v428 = vld [vmem:[%s420 + $0x38] sm:$0xff]
        %v429 = vld [vmem:[%s420 + $0x40] sm:$0xff]
        %v430 = vld [vmem:[%s420 + $0x48] sm:$0xff]
        %v431 = vld [vmem:[%s420 + $0x50] sm:$0xff]
        %v432 = vld [vmem:[%s420 + $0x58] sm:$0xff]
        %v433 = vld [vmem:[%s420 + $0x60] sm:$0xff]
        %v434 = vld [vmem:[%s420 + $0x68] sm:$0xff]
        %v435 = vld [vmem:[%s420 + $0x70] sm:$0xff]
        %v436 = vld [vmem:[%s420 + $0x78] sm:$0xff]
        %v437 = vld [vmem:[%s420 + $0x80] sm:$0xff]
        %v438 = vld [vmem:[%s420 + $0x88] sm:$0xff]
        %v439 = vld [vmem:[%s420 + $0x90] sm:$0xff]
        %v440 = vld [vmem:[%s420 + $0x98] sm:$0xff]
        %v441 = vld [vmem:[%s420 + $0xa0] sm:$0xff]
        %v442 = vld [vmem:[%s420 + $0xa8] sm:$0xff]
        %v443 = vld [vmem:[%s420 + $0xb0] sm:$0xff]
        %v444 = vld [vmem:[%s420 + $0xb8] sm:$0xff]
        %v445 = vld [vmem:[%s420 + $0xc0] sm:$0xff]
        %v446 = vld [vmem:[%s420 + $0xc8] sm:$0xff]
        %v447 = vld [vmem:[%s420 + $0xd0] sm:$0xff]
        %v448 = vld [vmem:[%s420 + $0xd8] sm:$0xff]
        %v449 = vld [vmem:[%s420 + $0xe0] sm:$0xff]
        %v450 = vld [vmem:[%s420 + $0xe8] sm:$0xff]
        %v451 = vld [vmem:[%s420 + $0xf0] sm:$0xff]
        %v452 = vld [vmem:[%s420 + $0xf8] sm:$0xff]
        %v485 = vunpack.c.l.b16 %v421
        %v486 = vunpack.c.h.b16 %v421
        %v487 = vunpack.c.l.b16 %v422
        %v488 = vunpack.c.h.b16 %v422
        %v489 = vunpack.c.l.b16 %v423
        %v490 = vunpack.c.h.b16 %v423
        %v491 = vunpack.c.l.b16 %v424
        %v492 = vunpack.c.h.b16 %v424
        %v493 = vunpack.c.l.b16 %v425
        %v494 = vunpack.c.h.b16 %v425
        %v495 = vunpack.c.l.b16 %v426
        %v496 = vunpack.c.h.b16 %v426
        %v497 = vunpack.c.l.b16 %v427
        %v498 = vunpack.c.h.b16 %v427
        %v499 = vunpack.c.l.b16 %v428
        %v500 = vunpack.c.h.b16 %v428
        %v501 = vunpack.c.l.b16 %v429
        %v502 = vunpack.c.h.b16 %v429
        %v503 = vunpack.c.l.b16 %v430
        %v504 = vunpack.c.h.b16 %v430
        %v505 = vunpack.c.l.b16 %v431
        %v506 = vunpack.c.h.b16 %v431
        %v507 = vunpack.c.l.b16 %v432
        %v508 = vunpack.c.h.b16 %v432
        %v509 = vunpack.c.l.b16 %v433
        %v510 = vunpack.c.h.b16 %v433
        %v511 = vunpack.c.l.b16 %v434
        %v512 = vunpack.c.h.b16 %v434
        %v513 = vunpack.c.l.b16 %v435
        %v514 = vunpack.c.h.b16 %v435
        %v515 = vunpack.c.l.b16 %v436
        %v516 = vunpack.c.h.b16 %v436
        %v517 = vunpack.c.l.b16 %v437
        %v518 = vunpack.c.h.b16 %v437
        %v519 = vunpack.c.l.b16 %v438
        %v520 = vunpack.c.h.b16 %v438
        %v521 = vunpack.c.l.b16 %v439
        %v522 = vunpack.c.h.b16 %v439
        %v523 = vunpack.c.l.b16 %v440
        %v524 = vunpack.c.h.b16 %v440
        %v525 = vunpack.c.l.b16 %v441
        %v526 = vunpack.c.h.b16 %v441
        %v527 = vunpack.c.l.b16 %v442
        %v528 = vunpack.c.h.b16 %v442
        %v529 = vunpack.c.l.b16 %v443
        %v530 = vunpack.c.h.b16 %v443
        %v531 = vunpack.c.l.b16 %v444
        %v532 = vunpack.c.h.b16 %v444
        %v533 = vunpack.c.l.b16 %v445
        %v534 = vunpack.c.h.b16 %v445
        %v535 = vunpack.c.l.b16 %v446
        %v536 = vunpack.c.h.b16 %v446
        %v537 = vunpack.c.l.b16 %v447
        %v538 = vunpack.c.h.b16 %v447
        %v539 = vunpack.c.l.b16 %v448
        %v540 = vunpack.c.h.b16 %v448
        %v541 = vunpack.c.l.b16 %v449
        %v542 = vunpack.c.h.b16 %v449
        %v543 = vunpack.c.l.b16 %v450
        %v544 = vunpack.c.h.b16 %v450
        %v545 = vunpack.c.l.b16 %v451
        %v546 = vunpack.c.h.b16 %v451
        %v547 = vunpack.c.l.b16 %v452
        %v548 = vunpack.c.h.b16 %v452
        %v549 = vpack.c.b16 %v487, %v485
        %v550 = vpack.c.b16 %v488, %v486
        %v551 = vpack.c.b16 %v491, %v489
        %v552 = vpack.c.b16 %v492, %v490
        %v553 = vpack.c.b16 %v495, %v493
        %v554 = vpack.c.b16 %v496, %v494
        %v555 = vpack.c.b16 %v499, %v497
        %v556 = vpack.c.b16 %v500, %v498
        %v557 = vpack.c.b16 %v503, %v501
        %v558 = vpack.c.b16 %v504, %v502
        %v559 = vpack.c.b16 %v507, %v505
        %v560 = vpack.c.b16 %v508, %v506
        %v561 = vpack.c.b16 %v511, %v509
        %v562 = vpack.c.b16 %v512, %v510
        %v563 = vpack.c.b16 %v515, %v513
        %v564 = vpack.c.b16 %v516, %v514
        %v565 = vpack.c.b16 %v519, %v517
        %v566 = vpack.c.b16 %v520, %v518
        %v567 = vpack.c.b16 %v523, %v521
        %v568 = vpack.c.b16 %v524, %v522
        %v569 = vpack.c.b16 %v527, %v525
        %v570 = vpack.c.b16 %v528, %v526
        %v571 = vpack.c.b16 %v531, %v529
        %v572 = vpack.c.b16 %v532, %v530
        %v573 = vpack.c.b16 %v535, %v533
        %v574 = vpack.c.b16 %v536, %v534
        %v575 = vpack.c.b16 %v539, %v537
        %v576 = vpack.c.b16 %v540, %v538
        %v577 = vpack.c.b16 %v543, %v541
        %v578 = vpack.c.b16 %v544, %v542
        %v579 = vpack.c.b16 %v547, %v545
        %v580 = vpack.c.b16 %v548, %v546
        %613 = vmatprep.subr.bf16.mxu0 %v550
        %614 = vmatpush1.bf16.msra.mxu0 %v549
        %615 = vmatprep.subr.bf16.mxu0 %v552
        %616 = vmatpush1.bf16.msra.mxu0 %v551
        %617 = vmatprep.subr.bf16.mxu0 %v554
        %618 = vmatpush1.bf16.msra.mxu0 %v553
        %619 = vmatprep.subr.bf16.mxu0 %v556
        %620 = vmatpush1.bf16.msra.mxu0 %v555
        %621 = vmatprep.subr.bf16.mxu0 %v558
        %622 = vmatpush1.bf16.msra.mxu0 %v557
        %623 = vmatprep.subr.bf16.mxu0 %v560
        %624 = vmatpush1.bf16.msra.mxu0 %v559
        %625 = vmatprep.subr.bf16.mxu0 %v562
        %626 = vmatpush1.bf16.msra.mxu0 %v561
        %627 = vmatprep.subr.bf16.mxu0 %v564
        %628 = vmatpush1.bf16.msra.mxu0 %v563
        %629 = vmatprep.subr.bf16.mxu0 %v566
        %630 = vmatpush1.bf16.msra.mxu0 %v565
        %631 = vmatprep.subr.bf16.mxu0 %v568
        %632 = vmatpush1.bf16.msra.mxu0 %v567
        %633 = vmatprep.subr.bf16.mxu0 %v570
        %634 = vmatpush1.bf16.msra.mxu0 %v569
        %635 = vmatprep.subr.bf16.mxu0 %v572
        %636 = vmatpush1.bf16.msra.mxu0 %v571
        %637 = vmatprep.subr.bf16.mxu0 %v574
        %638 = vmatpush1.bf16.msra.mxu0 %v573
        %639 = vmatprep.subr.bf16.mxu0 %v576
        %640 = vmatpush1.bf16.msra.mxu0 %v575
        %641 = vmatprep.subr.bf16.mxu0 %v578
        %642 = vmatpush1.bf16.msra.mxu0 %v577
        %643 = vmatprep.subr.bf16.mxu0 %v580
        %644 = vmatpush1.bf16.msra.mxu0 %v579
        %645 = vmatprep.mubr.bf16.mxu0 %v368
        %646 = vmatmul.mubr.bf16.gmra.mrb[0].mxu0 %v367
        %v647 = vpop.f32.mrb[0].mxu0
        %v648 = vadd.f32 0.0, %v647
        %v649 = vpop.f32.mrb[0].mxu0
        %v650 = vadd.f32 0.0, %v649
        %v651 = vpop.f32.mrb[0].mxu0
        %v652 = vpop.f32.mrb[0].mxu0
        %653 = vdwg.mxu0
        %v686 = vunpack.c.l.b16 %v388
        %v687 = vunpack.c.h.b16 %v388
        %v688 = vunpack.c.l.b16 %v389
        %v689 = vunpack.c.h.b16 %v389
        %v690 = vunpack.c.l.b16 %v390
        %v691 = vunpack.c.h.b16 %v390
        %v692 = vunpack.c.l.b16 %v391
        %v693 = vunpack.c.h.b16 %v391
        %v694 = vunpack.c.l.b16 %v392
        %v695 = vunpack.c.h.b16 %v392
        %v696 = vunpack.c.l.b16 %v393
        %v697 = vunpack.c.h.b16 %v393
        %v698 = vunpack.c.l.b16 %v394
        %v699 = vunpack.c.h.b16 %v394
        %v700 = vunpack.c.l.b16 %v395
        %v701 = vunpack.c.h.b16 %v395
        %v702 = vunpack.c.l.b16 %v396
        %v703 = vunpack.c.h.b16 %v396
        %v704 = vunpack.c.l.b16 %v397
        %v705 = vunpack.c.h.b16 %v397
        %v706 = vunpack.c.l.b16 %v398
        %v707 = vunpack.c.h.b16 %v398
        %v708 = vunpack.c.l.b16 %v399
        %v709 = vunpack.c.h.b16 %v399
        %v710 = vunpack.c.l.b16 %v400
        %v711 = vunpack.c.h.b16 %v400
        %v712 = vunpack.c.l.b16 %v401
        %v713 = vunpack.c.h.b16 %v401
        %v714 = vunpack.c.l.b16 %v402
        %v715 = vunpack.c.h.b16 %v402
        %v716 = vunpack.c.l.b16 %v403
        %v717 = vunpack.c.h.b16 %v403
        %v718 = vunpack.c.l.b16 %v404
        %v719 = vunpack.c.h.b16 %v404
        %v720 = vunpack.c.l.b16 %v405
        %v721 = vunpack.c.h.b16 %v405
        %v722 = vunpack.c.l.b16 %v406
        %v723 = vunpack.c.h.b16 %v406
        %v724 = vunpack.c.l.b16 %v407
        %v725 = vunpack.c.h.b16 %v407
        %v726 = vunpack.c.l.b16 %v408
        %v727 = vunpack.c.h.b16 %v408
        %v728 = vunpack.c.l.b16 %v409
        %v729 = vunpack.c.h.b16 %v409
        %v730 = vunpack.c.l.b16 %v410
        %v731 = vunpack.c.h.b16 %v410
        %v732 = vunpack.c.l.b16 %v411
        %v733 = vunpack.c.h.b16 %v411
        %v734 = vunpack.c.l.b16 %v412
        %v735 = vunpack.c.h.b16 %v412
        %v736 = vunpack.c.l.b16 %v413
        %v737 = vunpack.c.h.b16 %v413
        %v738 = vunpack.c.l.b16 %v414
        %v739 = vunpack.c.h.b16 %v414
        %v740 = vunpack.c.l.b16 %v415
        %v741 = vunpack.c.h.b16 %v415
        %v742 = vunpack.c.l.b16 %v416
        %v743 = vunpack.c.h.b16 %v416
        %v744 = vunpack.c.l.b16 %v417
        %v745 = vunpack.c.h.b16 %v417
        %v746 = vunpack.c.l.b16 %v418
        %v747 = vunpack.c.h.b16 %v418
        %v748 = vunpack.c.l.b16 %v419
        %v749 = vunpack.c.h.b16 %v419
        %v750 = vpack.c.b16 %v688, %v686
        %v751 = vpack.c.b16 %v689, %v687
        %v752 = vpack.c.b16 %v692, %v690
        %v753 = vpack.c.b16 %v693, %v691
        %v754 = vpack.c.b16 %v696, %v694
        %v755 = vpack.c.b16 %v697, %v695
        %v756 = vpack.c.b16 %v700, %v698
        %v757 = vpack.c.b16 %v701, %v699
        %v758 = vpack.c.b16 %v704, %v702
        %v759 = vpack.c.b16 %v705, %v703
        %v760 = vpack.c.b16 %v708, %v706
        %v761 = vpack.c.b16 %v709, %v707
        %v762 = vpack.c.b16 %v712, %v710
        %v763 = vpack.c.b16 %v713, %v711
        %v764 = vpack.c.b16 %v716, %v714
        %v765 = vpack.c.b16 %v717, %v715
        %v766 = vpack.c.b16 %v720, %v718
        %v767 = vpack.c.b16 %v721, %v719
        %v768 = vpack.c.b16 %v724, %v722
        %v769 = vpack.c.b16 %v725, %v723
        %v770 = vpack.c.b16 %v728, %v726
        %v771 = vpack.c.b16 %v729, %v727
        %v772 = vpack.c.b16 %v732, %v730
        %v773 = vpack.c.b16 %v733, %v731
        %v774 = vpack.c.b16 %v736, %v734
        %v775 = vpack.c.b16 %v737, %v735
        %v776 = vpack.c.b16 %v740, %v738
        %v777 = vpack.c.b16 %v741, %v739
        %v778 = vpack.c.b16 %v744, %v742
        %v779 = vpack.c.b16 %v745, %v743
        %v780 = vpack.c.b16 %v748, %v746
        %v781 = vpack.c.b16 %v749, %v747
        %814 = vmatprep.subr.bf16.mxu0 %v751
        %815 = vmatpush1.bf16.msra.mxu0 %v750
        %816 = vmatprep.subr.bf16.mxu0 %v753
        %817 = vmatpush1.bf16.msra.mxu0 %v752
        %818 = vmatprep.subr.bf16.mxu0 %v755
        %819 = vmatpush1.bf16.msra.mxu0 %v754
        %820 = vmatprep.subr.bf16.mxu0 %v757
        %821 = vmatpush1.bf16.msra.mxu0 %v756
        %822 = vmatprep.subr.bf16.mxu0 %v759
        %823 = vmatpush1.bf16.msra.mxu0 %v758
        %824 = vmatprep.subr.bf16.mxu0 %v761
        %825 = vmatpush1.bf16.msra.mxu0 %v760
        %826 = vmatprep.subr.bf16.mxu0 %v763
        %827 = vmatpush1.bf16.msra.mxu0 %v762
        %828 = vmatprep.subr.bf16.mxu0 %v765
        %829 = vmatpush1.bf16.msra.mxu0 %v764
        %830 = vmatprep.subr.bf16.mxu0 %v767
        %831 = vmatpush1.bf16.msra.mxu0 %v766
        %832 = vmatprep.subr.bf16.mxu0 %v769
        %833 = vmatpush1.bf16.msra.mxu0 %v768
        %834 = vmatprep.subr.bf16.mxu0 %v771
        %835 = vmatpush1.bf16.msra.mxu0 %v770
        %836 = vmatprep.subr.bf16.mxu0 %v773
        %837 = vmatpush1.bf16.msra.mxu0 %v772
        %838 = vmatprep.subr.bf16.mxu0 %v775
        %839 = vmatpush1.bf16.msra.mxu0 %v774
        %840 = vmatprep.subr.bf16.mxu0 %v777
        %841 = vmatpush1.bf16.msra.mxu0 %v776
        %842 = vmatprep.subr.bf16.mxu0 %v779
        %843 = vmatpush1.bf16.msra.mxu0 %v778
        %844 = vmatprep.subr.bf16.mxu0 %v781
        %845 = vmatpush1.bf16.msra.mxu0 %v780
        %846 = vmatprep.mubr.bf16.mxu0 %v366
        %847 = vmatmul.mubr.bf16.gmra.mrb[0].mxu0 %v365
        %v848 = vpop.f32.mrb[0].mxu0
        %v849 = vadd.f32 %v648, %v848
        %v850 = vpop.f32.mrb[0].mxu0
        %v851 = vadd.f32 %v650, %v850
        %v852 = vpop.f32.mrb[0].mxu0
        %v853 = vpop.f32.mrb[0].mxu0
        %854 = vdwg.mxu0
        %s855 = scalar_lea.vmem [#allocation7], 512
        %v856 = vld [vmem:[%s855] sm:$0xff]
        %v857 = vld [vmem:[%s855 + $0x8] sm:$0xff]
        %v858 = vld [vmem:[%s855 + $0x10] sm:$0xff]
        %v859 = vld [vmem:[%s855 + $0x18] sm:$0xff]
        %v860 = vld [vmem:[%s855 + $0x20] sm:$0xff]
        %v861 = vld [vmem:[%s855 + $0x28] sm:$0xff]
        %v862 = vld [vmem:[%s855 + $0x30] sm:$0xff]
        %v863 = vld [vmem:[%s855 + $0x38] sm:$0xff]
        %v864 = vld [vmem:[%s855 + $0x40] sm:$0xff]
        %v865 = vld [vmem:[%s855 + $0x48] sm:$0xff]
        %v866 = vld [vmem:[%s855 + $0x50] sm:$0xff]
        %v867 = vld [vmem:[%s855 + $0x58] sm:$0xff]
        %v868 = vld [vmem:[%s855 + $0x60] sm:$0xff]
        %v869 = vld [vmem:[%s855 + $0x68] sm:$0xff]
        %v870 = vld [vmem:[%s855 + $0x70] sm:$0xff]
        %v871 = vld [vmem:[%s855 + $0x78] sm:$0xff]
        %v872 = vld [vmem:[%s855 + $0x80] sm:$0xff]
        %v873 = vld [vmem:[%s855 + $0x88] sm:$0xff]
        %v874 = vld [vmem:[%s855 + $0x90] sm:$0xff]
        %v875 = vld [vmem:[%s855 + $0x98] sm:$0xff]
        %v876 = vld [vmem:[%s855 + $0xa0] sm:$0xff]
        %v877 = vld [vmem:[%s855 + $0xa8] sm:$0xff]
        %v878 = vld [vmem:[%s855 + $0xb0] sm:$0xff]
        %v879 = vld [vmem:[%s855 + $0xb8] sm:$0xff]
        %v880 = vld [vmem:[%s855 + $0xc0] sm:$0xff]
        %v881 = vld [vmem:[%s855 + $0xc8] sm:$0xff]
        %v882 = vld [vmem:[%s855 + $0xd0] sm:$0xff]
        %v883 = vld [vmem:[%s855 + $0xd8] sm:$0xff]
        %v884 = vld [vmem:[%s855 + $0xe0] sm:$0xff]
        %v885 = vld [vmem:[%s855 + $0xe8] sm:$0xff]
        %v886 = vld [vmem:[%s855 + $0xf0] sm:$0xff]
        %v887 = vld [vmem:[%s855 + $0xf8] sm:$0xff]
        %v920 = vunpack.c.l.b16 %v856
        %v921 = vunpack.c.h.b16 %v856
        %v922 = vunpack.c.l.b16 %v857
        %v923 = vunpack.c.h.b16 %v857
        %v924 = vunpack.c.l.b16 %v858
        %v925 = vunpack.c.h.b16 %v858
        %v926 = vunpack.c.l.b16 %v859
        %v927 = vunpack.c.h.b16 %v859
        %v928 = vunpack.c.l.b16 %v860
        %v929 = vunpack.c.h.b16 %v860
        %v930 = vunpack.c.l.b16 %v861
        %v931 = vunpack.c.h.b16 %v861
        %v932 = vunpack.c.l.b16 %v862
        %v933 = vunpack.c.h.b16 %v862
        %v934 = vunpack.c.l.b16 %v863
        %v935 = vunpack.c.h.b16 %v863
        %v936 = vunpack.c.l.b16 %v864
        %v937 = vunpack.c.h.b16 %v864
        %v938 = vunpack.c.l.b16 %v865
        %v939 = vunpack.c.h.b16 %v865
        %v940 = vunpack.c.l.b16 %v866
        %v941 = vunpack.c.h.b16 %v866
        %v942 = vunpack.c.l.b16 %v867
        %v943 = vunpack.c.h.b16 %v867
        %v944 = vunpack.c.l.b16 %v868
        %v945 = vunpack.c.h.b16 %v868
        %v946 = vunpack.c.l.b16 %v869
        %v947 = vunpack.c.h.b16 %v869
        %v948 = vunpack.c.l.b16 %v870
        %v949 = vunpack.c.h.b16 %v870
        %v950 = vunpack.c.l.b16 %v871
        %v951 = vunpack.c.h.b16 %v871
        %v952 = vunpack.c.l.b16 %v872
        %v953 = vunpack.c.h.b16 %v872
        %v954 = vunpack.c.l.b16 %v873
        %v955 = vunpack.c.h.b16 %v873
        %v956 = vunpack.c.l.b16 %v874
        %v957 = vunpack.c.h.b16 %v874
        %v958 = vunpack.c.l.b16 %v875
        %v959 = vunpack.c.h.b16 %v875
        %v960 = vunpack.c.l.b16 %v876
        %v961 = vunpack.c.h.b16 %v876
        %v962 = vunpack.c.l.b16 %v877
        %v963 = vunpack.c.h.b16 %v877
        %v964 = vunpack.c.l.b16 %v878
        %v965 = vunpack.c.h.b16 %v878
        %v966 = vunpack.c.l.b16 %v879
        %v967 = vunpack.c.h.b16 %v879
        %v968 = vunpack.c.l.b16 %v880
        %v969 = vunpack.c.h.b16 %v880
        %v970 = vunpack.c.l.b16 %v881
        %v971 = vunpack.c.h.b16 %v881
        %v972 = vunpack.c.l.b16 %v882
        %v973 = vunpack.c.h.b16 %v882
        %v974 = vunpack.c.l.b16 %v883
        %v975 = vunpack.c.h.b16 %v883
        %v976 = vunpack.c.l.b16 %v884
        %v977 = vunpack.c.h.b16 %v884
        %v978 = vunpack.c.l.b16 %v885
        %v979 = vunpack.c.h.b16 %v885
        %v980 = vunpack.c.l.b16 %v886
        %v981 = vunpack.c.h.b16 %v886
        %v982 = vunpack.c.l.b16 %v887
        %v983 = vunpack.c.h.b16 %v887
        %v984 = vpack.c.b16 %v922, %v920
        %v985 = vpack.c.b16 %v923, %v921
        %v986 = vpack.c.b16 %v926, %v924
        %v987 = vpack.c.b16 %v927, %v925
        %v988 = vpack.c.b16 %v930, %v928
        %v989 = vpack.c.b16 %v931, %v929
        %v990 = vpack.c.b16 %v934, %v932
        %v991 = vpack.c.b16 %v935, %v933
        %v992 = vpack.c.b16 %v938, %v936
        %v993 = vpack.c.b16 %v939, %v937
        %v994 = vpack.c.b16 %v942, %v940
        %v995 = vpack.c.b16 %v943, %v941
        %v996 = vpack.c.b16 %v946, %v944
        %v997 = vpack.c.b16 %v947, %v945
        %v998 = vpack.c.b16 %v950, %v948
        %v999 = vpack.c.b16 %v951, %v949
        %v1000 = vpack.c.b16 %v954, %v952
        %v1001 = vpack.c.b16 %v955, %v953
        %v1002 = vpack.c.b16 %v958, %v956
        %v1003 = vpack.c.b16 %v959, %v957
        %v1004 = vpack.c.b16 %v962, %v960
        %v1005 = vpack.c.b16 %v963, %v961
        %v1006 = vpack.c.b16 %v966, %v964
        %v1007 = vpack.c.b16 %v967, %v965
        %v1008 = vpack.c.b16 %v970, %v968
        %v1009 = vpack.c.b16 %v971, %v969
        %v1010 = vpack.c.b16 %v974, %v972
        %v1011 = vpack.c.b16 %v975, %v973
        %v1012 = vpack.c.b16 %v978, %v976
        %v1013 = vpack.c.b16 %v979, %v977
        %v1014 = vpack.c.b16 %v982, %v980
        %v1015 = vpack.c.b16 %v983, %v981
        %1048 = vmatprep.subr.bf16.mxu0 %v985
        %1049 = vmatpush1.bf16.msra.mxu0 %v984
        %1050 = vmatprep.subr.bf16.mxu0 %v987
        %1051 = vmatpush1.bf16.msra.mxu0 %v986
        %1052 = vmatprep.subr.bf16.mxu0 %v989
        %1053 = vmatpush1.bf16.msra.mxu0 %v988
        %1054 = vmatprep.subr.bf16.mxu0 %v991
        %1055 = vmatpush1.bf16.msra.mxu0 %v990
        %1056 = vmatprep.subr.bf16.mxu0 %v993
        %1057 = vmatpush1.bf16.msra.mxu0 %v992
        %1058 = vmatprep.subr.bf16.mxu0 %v995
        %1059 = vmatpush1.bf16.msra.mxu0 %v994
        %1060 = vmatprep.subr.bf16.mxu0 %v997
        %1061 = vmatpush1.bf16.msra.mxu0 %v996
        %1062 = vmatprep.subr.bf16.mxu0 %v999
        %1063 = vmatpush1.bf16.msra.mxu0 %v998
        %1064 = vmatprep.subr.bf16.mxu0 %v1001
        %1065 = vmatpush1.bf16.msra.mxu0 %v1000
        %1066 = vmatprep.subr.bf16.mxu0 %v1003
        %1067 = vmatpush1.bf16.msra.mxu0 %v1002
        %1068 = vmatprep.subr.bf16.mxu0 %v1005
        %1069 = vmatpush1.bf16.msra.mxu0 %v1004
        %1070 = vmatprep.subr.bf16.mxu0 %v1007
        %1071 = vmatpush1.bf16.msra.mxu0 %v1006
        %1072 = vmatprep.subr.bf16.mxu0 %v1009
        %1073 = vmatpush1.bf16.msra.mxu0 %v1008
        %1074 = vmatprep.subr.bf16.mxu0 %v1011
        %1075 = vmatpush1.bf16.msra.mxu0 %v1010
        %1076 = vmatprep.subr.bf16.mxu0 %v1013
        %1077 = vmatpush1.bf16.msra.mxu0 %v1012
        %1078 = vmatprep.subr.bf16.mxu0 %v1015
        %1079 = vmatpush1.bf16.msra.mxu0 %v1014
        %1080 = vmatprep.mubr.bf16.mxu0 %v387
        %1081 = vmatmul.mubr.bf16.gmra.mrb[0].mxu0 %v386
        %v1082 = vpop.f32.mrb[0].mxu0
        %v1083 = vadd.f32 0.0, %v1082
        %v1084 = vpop.f32.mrb[0].mxu0
        %v1085 = vadd.f32 0.0, %v1084
        %v1086 = vpop.f32.mrb[0].mxu0
        %v1087 = vpop.f32.mrb[0].mxu0
        %1088 = vdwg.mxu0
        %v1089 = vadd.f32 %v849, %v1083
        %v1090 = vadd.f32 %v851, %v1085
        %v1091 = vld [vmem:[%s3] sm:$0x3]
        %v1093 = vlaneseq
        %v1094 = vshrl.u32 %v1093, 7
        %v1095 = vsub.s32 0, %v1094
        %v1096 = vrot.slane %v1091, %v1095
        %v1097 = vlaneseq
        %v1098 = vshrl.u32 %v1097, 7
        %v1099 = vsub.s32 1, %v1098
        %v1100 = vrot.slane %v1091, %v1099
        %v1103 = vadd.f32 %v1089, %v1096
        %v1104 = vadd.f32 %v1090, %v1100
        %v1105 = vadd.f32 %v342, %v1103
        %v1106 = vadd.f32 %v343, %v1104
        %v1107 = vadd.f32 %v1105, %v1106
        %1108 = vadd.xlane.f32.xlu0 %v1107
        %v1109 = vpop.xlane.xlu0 %1108
        %v1110 = vrcp.pop 256.0
        %v1111 = vmul.f32 %v1109, %v1110
        %v1112 = vsub.f32 %v1105, %v1111
        %v1113 = vsub.f32 %v1106, %v1111
        %v1114 = vmul.f32 %v1112, %v1112
        %v1115 = vmul.f32 %v1113, %v1113
        %v1116 = vadd.f32 %v1114, %v1115
        %1117 = vadd.xlane.f32.xlu0 %v1116
        %v1118 = vpop.xlane.xlu0 %1117
        %v1119 = vmul.f32 %v1118, %v1110
        %v1120 = vadd.f32 %v1119, 1e-05
        %v1121 = vrsqrt.pop %v1120
        %v1122 = vmul.f32 %v1112, %v1121
        %v1123 = vmul.f32 %v1113, %v1121
        %v1124 = vld [vmem:[%s4] sm:$0x3]
        %v1126 = vlaneseq
        %v1127 = vshrl.u32 %v1126, 7
        %v1128 = vsub.s32 0, %v1127
        %v1129 = vrot.slane %v1124, %v1128
        %v1130 = vlaneseq
        %v1131 = vshrl.u32 %v1130, 7
        %v1132 = vsub.s32 1, %v1131
        %v1133 = vrot.slane %v1124, %v1132
        %v1136 = vmul.f32 %v1122, %v1129
        %v1137 = vmul.f32 %v1123, %v1133
        %v1138 = vld [vmem:[%s5] sm:$0x3]
        %v1140 = vlaneseq
        %v1141 = vshrl.u32 %v1140, 7
        %v1142 = vsub.s32 0, %v1141
        %v1143 = vrot.slane %v1138, %v1142
        %v1144 = vlaneseq
        %v1145 = vshrl.u32 %v1144, 7
        %v1146 = vsub.s32 1, %v1145
        %v1147 = vrot.slane %v1138, %v1146
        %v1150 = vadd.f32 %v1136, %v1143
        %v1151 = vadd.f32 %v1137, %v1147
        %1152 = vst [vmem:[%s341] sm:$0xff] %v1150
        %1153 = vst [vmem:[%s341 + $0x8] sm:$0xff] %v1151
        %s1154 = sand.u32 %s188, 1
        %s1155 = scalar_lea.sflag [#allocation4], %s1154
        %s1156 = sand.u32 %s188, 1
        %s1157 = smul.addr %s1156, 16
        %s1158 = scalar_lea.vmem [#allocation8], %s1157
        // Predicated region
        $region57: #{tpu_custom_call.1} parent=43 // pred_check
          %p1159 = pneg %p198
        $region58: #{tpu_custom_call.1} parent=43 // pred_check_branch
          %1161 = sbr.rel (%p1159) target = $region60
        $region59: #{tpu_custom_call.1} parent=43 // pred_region
          %s1163 = ssub.s32 256, 256
          %1164 = vsyncadd %s1155, %s1163
          %s1165 = smul.addr %s31, 2
          %s1166 = smul.addr %s30, 6
          %s1167 = sadd.s32 %s1165, %s1166
          %s1168 = smul.addr %s1167, 128
          %s1169 = scalar_lea.hbm %s6, %s1168
          %s1171 = sshll.u32 %s1158, 4
          %s1172 = int_to_ptr.vmem [resolvable:$true] %s1171
          %1174 = dma.vmem_to_hbm [thread:$0]  %s1172, 256, %s1169, %s1155
        $region60: #{tpu_custom_call.1} parent=43 // pred_fallthru
          _
      $region44: #{tpu_custom_call.1} parent=5 // pred_fallthru
        _
      %p1175 = scmp.le.s32.totalorder 2, %s21
      // Predicated region
      $region61: #{tpu_custom_call.1} parent=5 // pred_check
        %p1176 = pneg %p1175
      $region62: #{tpu_custom_call.1} parent=5 // pred_check_branch
        %1178 = sbr.rel (%p1176) target = $region64
      $region63: #{tpu_custom_call.1} parent=5 // pred_region
        %s1179 = ssub.s32 %s21, 2
        // Predicated region
        $region65: #{tpu_custom_call.1} parent=63 // pred_check
          %p1180 = pneg %p204
        $region66: #{tpu_custom_call.1} parent=63 // pred_check_branch
          %1182 = sbr.rel (%p1180) target = $region68
        $region67: #{tpu_custom_call.1} parent=63 // pred_region
          %s1183 = sand.u32 %s189, 1
          %s1184 = scalar_lea.sflag [#allocation4], %s1183
          %s1185 = sand.u32 %s189, 1
          %s1186 = smul.addr %s1185, 16
          %s1187 = scalar_lea.vmem [#allocation8], %s1186
          %1188 = dma.done %s1184, 256
        $region68: #{tpu_custom_call.1} parent=63 // pred_fallthru
          _
      $region64: #{tpu_custom_call.1} parent=5 // pred_fallthru
        _
    $region6: #{tpu_custom_call.1} parent=1 // loop_footer
      %s25 = sadd.s32 1, %s21
    $region7: #{tpu_custom_call.1} parent=1 // loop_footer_branch
      %20 = sbr.rel target = $region3
    $region8: #{tpu_custom_call.1} parent=1 // loop_exit
      _
    %1189 = vsyncpa [#allocation3], 1
    %s1190 = scalar_lea.sflag [#allocation3], 1
    %1191 = vsyncpa %s1190, 1
    %1192 = vsyncpa [#allocation6], 1
    %s1193 = scalar_lea.sflag [#allocation6], 1
    %1194 = vsyncpa %s1193, 1
    %1195 = vsyncpa [#allocation4], 1
    %s1196 = scalar_lea.sflag [#allocation4], 1
    %1197 = vsyncpa %s1196, 1

</llo_original>
